<compile_context>
chip_gen: v7x
topology: tpu7x:2x2x1
jax: 0.10.0
libtpu: 0.0.40
codegen_flags: <defaults>
</compile_context>

<pallas_src>
import jax
import jax.numpy as jnp
from jax.experimental import pallas as pl
from jax.experimental.pallas import tpu as pltpu


def _round_up(x, m):
    return ((x + m - 1) // m) * m


def _cdiv(a, b):
    return (a + b - 1) // b


def _vmem_limit_bytes():
    """Generation-aware scoped-VMEM budget (conservative if unknown)."""
    cap = 64 * 1024 * 1024  # assume the smallest (v7x per-TC) if unknown
    try:
        info = pltpu.get_tpu_info()
        c = getattr(info, "vmem_capacity_bytes", None)
        if c:
            cap = int(c)
    except Exception:
        pass
    if cap >= 96 * 1024 * 1024:      # v5e / v6e: 128 MiB physical
        return 64 * 1024 * 1024
    return 48 * 1024 * 1024          # v7x: 64 MiB physical


# ---------------------------------------------------------------------------
# Fused single-pass kernel: pooled sums + tiny MLP + apply, all in VMEM.
# Block = (BN, C, HW); last two dims equal the full array dims, so no
# (8,128) divisibility issues and no padding.  Ragged batch edges are safe:
# garbage rows only produce garbage attention applied to garbage data that is
# written to dropped output rows.
# ---------------------------------------------------------------------------
def _make_fused_kernel(inv_hw):
    def kernel(x1_ref, x2_ref, w1a_ref, w1b_ref, w2_ref, b1_ref, b2_ref,
               out_ref):
        x1 = x1_ref[...]                                       # (BN, C, HW)
        x2 = x2_ref[...]

        # Global average pool per (batch, channel): lane reduction.
        p1 = jnp.sum(x1.astype(jnp.float32), axis=-1) * inv_hw  # (BN, C)
        p2 = jnp.sum(x2.astype(jnp.float32), axis=-1) * inv_hw  # (BN, C)

        # Tiny 2C -> C -> C MLP as broadcast-multiply + sublane reduce
        # (C is small; keep it off the MXU).
        w1a = w1a_ref[...]                                     # (C, C): x1 half
        w1b = w1b_ref[...]                                     # (C, C): x2 half
        w2 = w2_ref[...]                                       # (C, C)
        b1 = b1_ref[...]                                       # (1, C)
        b2 = b2_ref[...]                                       # (1, C)

        h = (jnp.sum(p1[:, :, None] * w1a[None, :, :], axis=1)
             + jnp.sum(p2[:, :, None] * w1b[None, :, :], axis=1) + b1)
        h = jnp.maximum(h, 0.0)                                # (BN, C)
        logits = jnp.sum(h[:, :, None] * w2[None, :, :], axis=1) + b2
        a = 1.0 / (1.0 + jnp.exp(-logits))                     # (BN, C), EUP

        out_ref[...] = (a[:, :, None] * x2.astype(jnp.float32)
                        + x1.astype(jnp.float32)).astype(out_ref.dtype)

    return kernel


def _cab_fused(x1, x2, w1, b1, w2, b2, *, vmem_limit, block_budget):
    N, C, H, W = x1.shape
    HW = H * W
    dsize = jnp.dtype(x1.dtype).itemsize
    f32 = jnp.float32

    x1r = x1.reshape(N, C, HW)
    x2r = x2.reshape(N, C, HW)

    # Pre-split / pre-transpose the tiny MLP weights (no in-kernel transpose
    # or concat needed).  conv1 weight acts on cat([x1, x2]) pooled channels.
    w1a_t = w1[:, :C].astype(f32).T                   # (C, C) for pooled(x1)
    w1b_t = w1[:, C:].astype(f32).T                   # (C, C) for pooled(x2)
    w2_t = w2.astype(f32).T                           # (C, C)
    b1r = b1.astype(f32).reshape(1, C)
    b2r = b2.astype(f32).reshape(1, C)

    # Batch-block size: ~block_budget bytes of x per block (layout-padded
    # footprint), and >=2 grid steps whenever N >= 2 (v7x megacore).
    per_item = _round_up(C, 8) * _round_up(HW, 128) * dsize
    bn = max(1, block_budget // per_item)
    if N >= 2:
        bn = min(bn, _cdiv(N, 2))
    bn = max(1, min(bn, N))
    n_tiles = _cdiv(N, bn)

    cost = pl.CostEstimate(
        flops=5 * N * C * HW,
        transcendentals=N * C,
        bytes_accessed=3 * N * C * HW * dsize,
    )
    big = lambda i: (i, 0, 0)
    const2 = lambda i: (0, 0)

    out = pl.pallas_call(
        _make_fused_kernel(1.0 / float(HW)),
        out_shape=jax.ShapeDtypeStruct((N, C, HW), x1.dtype),
        grid_spec=pltpu.PrefetchScalarGridSpec(
            num_scalar_prefetch=0,
            grid=(n_tiles,),
            in_specs=[
                pl.BlockSpec((bn, C, HW), big),        # x1
                pl.BlockSpec((bn, C, HW), big),        # x2
                pl.BlockSpec((C, C), const2),          # w1 (x1 half, T)
                pl.BlockSpec((C, C), const2),          # w1 (x2 half, T)
                pl.BlockSpec((C, C), const2),          # w2 (T)
                pl.BlockSpec((1, C), const2),          # b1
                pl.BlockSpec((1, C), const2),          # b2
            ],
            out_specs=pl.BlockSpec((bn, C, HW), big),
        ),
        compiler_params=pltpu.CompilerParams(
            dimension_semantics=("parallel",),
            vmem_limit_bytes=vmem_limit,
        ),
        cost_estimate=cost,
    )(x1r, x2r, w1a_t, w1b_t, w2_t, b1r, b2r)

    return out.reshape(N, C, H, W)


# ---------------------------------------------------------------------------
# Two-pass fallback (when one batch item's slabs do not fit in VMEM).
# Pass 1: pooled sums, HW reduction axis last ("arbitrary"), (rows,1) f32
#         resident accumulators, ragged HW edge masked in-kernel.
# Pass 2: fused elementwise apply out = a*x2 + x1, fully "parallel".
# ---------------------------------------------------------------------------
def _make_pool_kernel(hw, tn):
    rem = hw % tn

    def kernel(x1_ref, x2_ref, s1_ref, s2_ref):
        k = pl.program_id(1)

        @pl.when(k == 0)
        def _():
            s1_ref[...] = jnp.zeros_like(s1_ref)
            s2_ref[...] = jnp.zeros_like(s2_ref)

        def accum(mask=None):
            a = x1_ref[...].astype(jnp.float32)
            b = x2_ref[...].astype(jnp.float32)
            if mask is not None:
                a = jnp.where(mask, a, 0.0)
                b = jnp.where(mask, b, 0.0)
            s1_ref[...] += jnp.sum(a, axis=-1, keepdims=True)
            s2_ref[...] += jnp.sum(b, axis=-1, keepdims=True)

        if rem == 0:
            accum()
        else:
            last = pl.num_programs(1) - 1

            @pl.when(k != last)
            def _():
                accum()

            @pl.when(k == last)
            def _():
                lane = jax.lax.broadcasted_iota(jnp.int32, x1_ref.shape, 1)
                accum(lane < rem)

    return kernel


def _apply_kernel(a_ref, x1_ref, x2_ref, out_ref):
    out_ref[...] = (a_ref[...] * x2_ref[...] + x1_ref[...]).astype(out_ref.dtype)


def _cab_two_pass(x1, x2, w1, b1, w2, b2, *, vmem_limit, block_budget):
    N, C, H, W = x1.shape
    rows = N * C
    HW = H * W
    dsize = jnp.dtype(x1.dtype).itemsize

    x1f = x1.reshape(rows, HW)     # no-op reshapes, no padding, no copies
    x2f = x2.reshape(rows, HW)

    # Lane tile: multiple of 128, <= 2048.  Row tile sized for ~block_budget
    # bytes per streamed block; ragged edges handled by cdiv grids.
    TN = min(2048, _round_up(HW, 128))
    TM = max(8, (block_budget // (TN * dsize)) // 8 * 8)
    TM = min(TM, _round_up(rows, 8))
    if rows > 8 and _cdiv(rows, TM) < 2:
        TM = max(8, _round_up(_cdiv(rows, 2), 8))   # >=2 row tiles (megacore)
    n_row_tiles = _cdiv(rows, TM)
    n_hw_tiles = _cdiv(HW, TN)

    # ----- pass 1: pooled sums ---------------------------------------------
    pool_cost = pl.CostEstimate(
        flops=2 * rows * HW, transcendentals=0,
        bytes_accessed=2 * rows * HW * dsize + 2 * rows * 4)
    s1, s2 = pl.pallas_call(
        _make_pool_kernel(HW, TN),
        out_shape=(jax.ShapeDtypeStruct((rows, 1), jnp.float32),
                   jax.ShapeDtypeStruct((rows, 1), jnp.float32)),
        grid_spec=pltpu.PrefetchScalarGridSpec(
            num_scalar_prefetch=0,
            grid=(n_row_tiles, n_hw_tiles),
            in_specs=[pl.BlockSpec((TM, TN), lambda i, k: (i, k)),
                      pl.BlockSpec((TM, TN), lambda i, k: (i, k))],
            out_specs=[pl.BlockSpec((TM, 1), lambda i, k: (i, 0)),
                       pl.BlockSpec((TM, 1), lambda i, k: (i, 0))]),
        compiler_params=pltpu.CompilerParams(
            dimension_semantics=("parallel", "arbitrary"),
            vmem_limit_bytes=vmem_limit),
        cost_estimate=pool_cost,
    )(x1f, x2f)

    # ----- tiny attention MLP (the two 1x1 convs) in plain XLA --------------
    inv_hw = 1.0 / float(HW)
    p1 = s1[:, 0].reshape(N, C) * inv_hw
    p2 = s2[:, 0].reshape(N, C) * inv_hw
    pooled = jnp.concatenate([p1, p2], axis=1)                 # (N, 2C)
    h = jnp.maximum(pooled @ w1.astype(jnp.float32).T
                    + b1.astype(jnp.float32), 0.0)
    a = jax.nn.sigmoid(h @ w2.astype(jnp.float32).T
                       + b2.astype(jnp.float32))               # (N, C)
    a_col = a.reshape(rows, 1)

    # ----- pass 2: fused apply out = a * x2 + x1 -----------------------------
    apply_cost = pl.CostEstimate(
        flops=2 * rows * HW, transcendentals=0,
        bytes_accessed=3 * rows * HW * dsize + rows * 4)
    out = pl.pallas_call(
        _apply_kernel,
        out_shape=jax.ShapeDtypeStruct((rows, HW), x1.dtype),
        grid_spec=pltpu.PrefetchScalarGridSpec(
            num_scalar_prefetch=0,
            grid=(n_row_tiles, n_hw_tiles),
            in_specs=[pl.BlockSpec((TM, 1), lambda i, j: (i, 0)),
                      pl.BlockSpec((TM, TN), lambda i, j: (i, j)),
                      pl.BlockSpec((TM, TN), lambda i, j: (i, j))],
            out_specs=pl.BlockSpec((TM, TN), lambda i, j: (i, j))),
        compiler_params=pltpu.CompilerParams(
            dimension_semantics=("parallel", "parallel"),
            vmem_limit_bytes=vmem_limit),
        cost_estimate=apply_cost,
    )(a_col, x1f, x2f)

    return out.reshape(N, C, H, W)


# ---------------------------------------------------------------------------
# Public entry point.
# ---------------------------------------------------------------------------
def cab_forward(x1, x2, w1, b1, w2, b2):
    """CAB forward.  x1, x2: (N,C,H,W); w1: (C,2C); b1: (C,); w2: (C,C); b2: (C,)."""
    N, C, H, W = x1.shape
    HW = H * W
    dsize = jnp.dtype(x1.dtype).itemsize

    vmem_limit = _vmem_limit_bytes()
    block_budget = min(4 * 1024 * 1024, vmem_limit // 12)   # ~2-4 MiB blocks

    # Fused path when one batch item's x1/x2/out slabs (double-buffered) fit
    # comfortably; otherwise fall back to the streaming two-pass scheme.
    per_item = _round_up(C, 8) * _round_up(HW, 128) * dsize
    if 6 * per_item <= vmem_limit - (8 << 20):
        return _cab_fused(x1, x2, w1, b1, w2, b2,
                          vmem_limit=vmem_limit, block_budget=block_budget)
    return _cab_two_pass(x1, x2, w1, b1, w2, b2,
                         vmem_limit=vmem_limit, block_budget=block_budget)


def cab_reference(x1, x2, w1, b1, w2, b2):
    cat = jnp.concatenate([x1, x2], axis=1)                 # (N, 2C, H, W)
    pooled = jnp.mean(cat, axis=(2, 3))                     # (N, 2C)
    h = jnp.maximum(pooled @ w1.T + b1, 0.0)                # (N, C)
    a = jax.nn.sigmoid(h @ w2.T + b2)                       # (N, C)
    a = a[:, :, None, None]
    return a * x2 + x1


if __name__ == "__main__":
    N, C, H, W = 2, 4, 16, 16
    in_channels, out_channels = 2 * C, C

    key = jax.random.PRNGKey(0)
    k1, k2, k3, k4, k5, k6 = jax.random.split(key, 6)

    x1 = jax.random.normal(k1, (N, C, H, W), dtype=jnp.float32)
    x2 = jax.random.normal(k2, (N, C, H, W), dtype=jnp.float32)

    # Deterministic synthetic parameters (shapes match nn.Conv2d 1x1 kernels).
    w1 = jax.random.normal(k3, (out_channels, in_channels), dtype=jnp.float32) * 0.2
    b1 = jax.random.normal(k4, (out_channels,), dtype=jnp.float32) * 0.1
    w2 = jax.random.normal(k5, (out_channels, out_channels), dtype=jnp.float32) * 0.2
    b2 = jax.random.normal(k6, (out_channels,), dtype=jnp.float32) * 0.1

    ref = cab_reference(x1, x2, w1, b1, w2, b2)

    # Default (fused) path.
    out = jax.block_until_ready(cab_forward(x1, x2, w1, b1, w2, b2))
    assert out.shape == (N, C, H, W)
    assert jnp.allclose(out, ref, atol=1e-5, rtol=1e-5), "fused path mismatch"

    # Exercise the two-pass fallback as well (used for very large C*H*W).
    out2 = jax.block_until_ready(
        _cab_two_pass(x1, x2, w1, b1, w2, b2,
                      vmem_limit=_vmem_limit_bytes(),
                      block_budget=4 * 1024 * 1024))
    assert jnp.allclose(out2, ref, atol=1e-5, rtol=1e-5), "two-pass mismatch"

    print("KERNEL_OK")
</pallas_src>

<mosaic_0001>
module attributes {stable_mosaic.version = 11 : i64} {
  func.func @kernel(%arg0: i32, %arg1: memref<1x4x256xf32, #tpu.memory_space<vmem>>, %arg2: memref<1x4x256xf32, #tpu.memory_space<vmem>>, %arg3: memref<4x4xf32, #tpu.memory_space<vmem>>, %arg4: memref<4x4xf32, #tpu.memory_space<vmem>>, %arg5: memref<4x4xf32, #tpu.memory_space<vmem>>, %arg6: memref<1x4xf32, #tpu.memory_space<vmem>>, %arg7: memref<1x4xf32, #tpu.memory_space<vmem>>, %arg8: memref<1x4x256xf32, #tpu.memory_space<vmem>>) attributes {dimension_semantics = [#tpu.dimension_semantics<parallel>], iteration_bounds = array<i64: 2>, scalar_prefetch = 0 : i64, scratch_operands = 0 : i64, tpu.core_type = #tpu.core_type<tc>, window_params = [{transform_indices = @transform_0, window_bounds = array<i64: 1, 4, 256>}, {transform_indices = @transform_1, window_bounds = array<i64: 1, 4, 256>}, {pipeline_mode = #tpu.pipeline_mode<synchronous>, transform_indices = @transform_2, window_bounds = array<i64: 4, 4>}, {pipeline_mode = #tpu.pipeline_mode<synchronous>, transform_indices = @transform_3, window_bounds = array<i64: 4, 4>}, {pipeline_mode = #tpu.pipeline_mode<synchronous>, transform_indices = @transform_4, window_bounds = array<i64: 4, 4>}, {pipeline_mode = #tpu.pipeline_mode<synchronous>, transform_indices = @transform_5, window_bounds = array<i64: 1, 4>}, {pipeline_mode = #tpu.pipeline_mode<synchronous>, transform_indices = @transform_6, window_bounds = array<i64: 1, 4>}, {transform_indices = @transform_7, window_bounds = array<i64: 1, 4, 256>}]} {
    %c0 = arith.constant 0 : index
    %c0_0 = arith.constant 0 : index
    %c0_1 = arith.constant 0 : index
    %0 = vector.load %arg1[%c0, %c0_0, %c0_1] : memref<1x4x256xf32, #tpu.memory_space<vmem>>, vector<1x4x256xf32>
    %c0_2 = arith.constant 0 : index
    %c0_3 = arith.constant 0 : index
    %c0_4 = arith.constant 0 : index
    %1 = vector.load %arg2[%c0_2, %c0_3, %c0_4] : memref<1x4x256xf32, #tpu.memory_space<vmem>>, vector<1x4x256xf32>
    %cst = arith.constant dense<0.000000e+00> : vector<1x4xf32>
    %2 = vector.multi_reduction <add>, %0, %cst [2] : vector<1x4x256xf32> to vector<1x4xf32>
    %cst_5 = arith.constant 3.906250e-03 : f32
    %3 = vector.broadcast %cst_5 : f32 to vector<1x4xf32>
    %4 = arith.mulf %2, %3 : vector<1x4xf32>
    %cst_6 = arith.constant dense<0.000000e+00> : vector<1x4xf32>
    %5 = vector.multi_reduction <add>, %1, %cst_6 [2] : vector<1x4x256xf32> to vector<1x4xf32>
    %cst_7 = arith.constant 3.906250e-03 : f32
    %6 = vector.broadcast %cst_7 : f32 to vector<1x4xf32>
    %7 = arith.mulf %5, %6 : vector<1x4xf32>
    %c0_8 = arith.constant 0 : index
    %c0_9 = arith.constant 0 : index
    %8 = vector.load %arg3[%c0_8, %c0_9] : memref<4x4xf32, #tpu.memory_space<vmem>>, vector<4x4xf32>
    %c0_10 = arith.constant 0 : index
    %c0_11 = arith.constant 0 : index
    %9 = vector.load %arg4[%c0_10, %c0_11] : memref<4x4xf32, #tpu.memory_space<vmem>>, vector<4x4xf32>
    %c0_12 = arith.constant 0 : index
    %c0_13 = arith.constant 0 : index
    %10 = vector.load %arg5[%c0_12, %c0_13] : memref<4x4xf32, #tpu.memory_space<vmem>>, vector<4x4xf32>
    %c0_14 = arith.constant 0 : index
    %c0_15 = arith.constant 0 : index
    %11 = vector.load %arg6[%c0_14, %c0_15] : memref<1x4xf32, #tpu.memory_space<vmem>>, vector<1x4xf32>
    %c0_16 = arith.constant 0 : index
    %c0_17 = arith.constant 0 : index
    %12 = vector.load %arg7[%c0_16, %c0_17] : memref<1x4xf32, #tpu.memory_space<vmem>>, vector<1x4xf32>
    %13 = vector.shape_cast %4 : vector<1x4xf32> to vector<1x4x1xf32>
    %14 = vector.shape_cast %8 : vector<4x4xf32> to vector<1x4x4xf32>
    %15 = vector.broadcast %13 : vector<1x4x1xf32> to vector<1x4x4xf32>
    %16 = arith.mulf %15, %14 : vector<1x4x4xf32>
    %cst_18 = arith.constant dense<0.000000e+00> : vector<1x4xf32>
    %17 = vector.multi_reduction <add>, %16, %cst_18 [1] : vector<1x4x4xf32> to vector<1x4xf32>
    %18 = vector.shape_cast %7 : vector<1x4xf32> to vector<1x4x1xf32>
    %19 = vector.shape_cast %9 : vector<4x4xf32> to vector<1x4x4xf32>
    %20 = vector.broadcast %18 : vector<1x4x1xf32> to vector<1x4x4xf32>
    %21 = arith.mulf %20, %19 : vector<1x4x4xf32>
    %cst_19 = arith.constant dense<0.000000e+00> : vector<1x4xf32>
    %22 = vector.multi_reduction <add>, %21, %cst_19 [1] : vector<1x4x4xf32> to vector<1x4xf32>
    %23 = arith.addf %17, %22 : vector<1x4xf32>
    %24 = arith.addf %23, %11 : vector<1x4xf32>
    %cst_20 = arith.constant 0.000000e+00 : f32
    %25 = vector.broadcast %cst_20 : f32 to vector<1x4xf32>
    %26 = arith.maximumf %24, %25 : vector<1x4xf32>
    %27 = vector.shape_cast %26 : vector<1x4xf32> to vector<1x4x1xf32>
    %28 = vector.shape_cast %10 : vector<4x4xf32> to vector<1x4x4xf32>
    %29 = vector.broadcast %27 : vector<1x4x1xf32> to vector<1x4x4xf32>
    %30 = arith.mulf %29, %28 : vector<1x4x4xf32>
    %cst_21 = arith.constant dense<0.000000e+00> : vector<1x4xf32>
    %31 = vector.multi_reduction <add>, %30, %cst_21 [1] : vector<1x4x4xf32> to vector<1x4xf32>
    %32 = arith.addf %31, %12 : vector<1x4xf32>
    %cst_22 = arith.constant 0.000000e+00 : f32
    %33 = vector.broadcast %cst_22 : f32 to vector<1x4xf32>
    %34 = arith.subf %33, %32 : vector<1x4xf32>
    %35 = math.exp %34 : vector<1x4xf32>
    %cst_23 = arith.constant 1.000000e+00 : f32
    %36 = vector.broadcast %cst_23 : f32 to vector<1x4xf32>
    %37 = arith.addf %36, %35 : vector<1x4xf32>
    %cst_24 = arith.constant 1.000000e+00 : f32
    %38 = vector.broadcast %cst_24 : f32 to vector<1x4xf32>
    %39 = arith.divf %38, %37 : vector<1x4xf32>
    %40 = vector.shape_cast %39 : vector<1x4xf32> to vector<1x4x1xf32>
    %41 = vector.broadcast %40 : vector<1x4x1xf32> to vector<1x4x256xf32>
    %42 = arith.mulf %41, %1 : vector<1x4x256xf32>
    %43 = arith.addf %42, %0 : vector<1x4x256xf32>
    %c0_25 = arith.constant 0 : index
    %c0_26 = arith.constant 0 : index
    %c0_27 = arith.constant 0 : index
    %44 = vector.load %arg8[%c0_25, %c0_26, %c0_27] : memref<1x4x256xf32, #tpu.memory_space<vmem>>, vector<1x4x256xf32>
    tpu.vector_store %arg8[%c0_25, %c0_26, %c0_27], %43 {strides = array<i32>} : memref<1x4x256xf32, #tpu.memory_space<vmem>>, vector<1x4x256xf32>,
    return
  }
  func.func @transform_0(%arg0: i32) -> (i32, i32, i32) {
    %c0_i32 = arith.constant 0 : i32
    %c0_i32_0 = arith.constant 0 : i32
    %c0_i32_1 = arith.constant 0 : i32
    return %arg0, %c0_i32, %c0_i32_0 : i32, i32, i32
  }
  func.func @transform_1(%arg0: i32) -> (i32, i32, i32) {
    %c0_i32 = arith.constant 0 : i32
    %c0_i32_0 = arith.constant 0 : i32
    %c0_i32_1 = arith.constant 0 : i32
    return %arg0, %c0_i32, %c0_i32_0 : i32, i32, i32
  }
  func.func @transform_2(%arg0: i32) -> (i32, i32) {
    %c0_i32 = arith.constant 0 : i32
    %c0_i32_0 = arith.constant 0 : i32
    %c0_i32_1 = arith.constant 0 : i32
    return %c0_i32, %c0_i32_0 : i32, i32
  }
  func.func @transform_3(%arg0: i32) -> (i32, i32) {
    %c0_i32 = arith.constant 0 : i32
    %c0_i32_0 = arith.constant 0 : i32
    %c0_i32_1 = arith.constant 0 : i32
    return %c0_i32, %c0_i32_0 : i32, i32
  }
  func.func @transform_4(%arg0: i32) -> (i32, i32) {
    %c0_i32 = arith.constant 0 : i32
    %c0_i32_0 = arith.constant 0 : i32
    %c0_i32_1 = arith.constant 0 : i32
    return %c0_i32, %c0_i32_0 : i32, i32
  }
  func.func @transform_5(%arg0: i32) -> (i32, i32) {
    %c0_i32 = arith.constant 0 : i32
    %c0_i32_0 = arith.constant 0 : i32
    %c0_i32_1 = arith.constant 0 : i32
    return %c0_i32, %c0_i32_0 : i32, i32
  }
  func.func @transform_6(%arg0: i32) -> (i32, i32) {
    %c0_i32 = arith.constant 0 : i32
    %c0_i32_0 = arith.constant 0 : i32
    %c0_i32_1 = arith.constant 0 : i32
    return %c0_i32, %c0_i32_0 : i32, i32
  }
  func.func @transform_7(%arg0: i32) -> (i32, i32, i32) {
    %c0_i32 = arith.constant 0 : i32
    %c0_i32_0 = arith.constant 0 : i32
    %c0_i32_1 = arith.constant 0 : i32
    return %arg0, %c0_i32, %c0_i32_0 : i32, i32, i32
  }
}

</mosaic_0001>

<llo_original>
// kernel: tpu_custom_call.1
$region0: #{tpu_custom_call.1}
  #allocation0 [shape = 'u32[]', space=smem, size = 0x4, offset = 0x4, fixed_abs, tag = 'smem constant byte address 0x4 - core index']
  #allocation1 [shape = 'u32[144,128]{1,0:T(1,128)}', space=vmem, size = 0x12000, scoped, tag = 'internal scratch']
  %s0 = inlined_call_operand.hbm [shape: f32[2,4,256], index: 0, kind: input, shape index: {}]
  %s1 = inlined_call_operand.hbm [shape: f32[2,4,256], index: 1, kind: input, shape index: {}]
  %s2 = inlined_call_operand.vmem [shape: f32[4,4], index: 2, kind: input, shape index: {}]
  %s3 = inlined_call_operand.vmem [shape: f32[4,4], index: 3, kind: input, shape index: {}]
  %s4 = inlined_call_operand.vmem [shape: f32[4,4], index: 4, kind: input, shape index: {}]
  %s5 = inlined_call_operand.vmem [shape: f32[1,4], index: 5, kind: input, shape index: {}]
  %s6 = inlined_call_operand.vmem [shape: f32[1,4], index: 6, kind: input, shape index: {}]
  %s7 = inlined_call_operand.hbm [shape: f32[2,4,256], index: 7, kind: output, shape index: {}]
  %s8 = sld [smem:[#allocation0]]
  $region69: #{tpu_custom_call.1} parent=0
    _
  %s10 = ssub.s32 1, %s8
  %s11 = scalar_select 0, %s10, %s8
  $region1: #{tpu_custom_call.1} parent=0
    #allocation2 [shape = 'u8[8192]{0}', space=vmem, size = 0x2000, scoped, tag = 'input window, operand 0']
    #allocation3 [shape = 's32[2]{0}', space=sflag, size = 0x8, scoped, tag = 'scoped memory for tpu_custom_call.1']
    #allocation4 [shape = 's32[2]{0}', space=sflag, size = 0x8, scoped, tag = 'scoped memory for tpu_custom_call.1']
    #allocation5 [shape = 'u8[8192]{0}', space=vmem, size = 0x2000, scoped, tag = 'input window, operand 1']
    #allocation6 [shape = 's32[2]{0}', space=sflag, size = 0x8, scoped, tag = 'scoped memory for tpu_custom_call.1']
    #allocation7 [shape = 'u8[8192]{0}', space=vmem, size = 0x2000, scoped, tag = 'output window, operand 0']
    %12 = vsyncpa [#allocation3], 0
    %s13 = scalar_lea.sflag [#allocation3], 1
    %14 = vsyncpa %s13, 0
    %15 = vsyncpa [#allocation6], 0
    %s16 = scalar_lea.sflag [#allocation6], 1
    %17 = vsyncpa %s16, 0
    %18 = vsyncpa [#allocation4], 0
    %s19 = scalar_lea.sflag [#allocation4], 1
    %20 = vsyncpa %s19, 0
    loop: start=0, step=1, limit=4
    $region2: #{tpu_custom_call.1} parent=1 // loop_pre_header
      _
    $region3: #{tpu_custom_call.1} parent=1 // loop_header
      %s22 = sphi 0, %s26
      %p23 = scmp.ge.s32.totalorder %s22, 4
      %s32 = sphi 0, %s34
      %s35 = sphi 0, %s32
      %s36 = sphi 0, %s35
      %s52 = sphi 0, %s36
      %s58 = sphi 0, %s60
      %s61 = sphi 0, %s58
      %s62 = sphi 0, %s61
      %s78 = sphi 0, %s62
      %s82 = sphi 0, %s82
      %s84 = sphi 0, %s82
      %s85 = sphi 0, %s84
      %s99 = sphi 0, %s85
      %s103 = sphi 0, %s103
      %s105 = sphi 0, %s103
      %s106 = sphi 0, %s105
      %s120 = sphi 0, %s106
      %s124 = sphi 0, %s124
      %s126 = sphi 0, %s124
      %s127 = sphi 0, %s126
      %s141 = sphi 0, %s127
      %s145 = sphi 0, %s145
      %s147 = sphi 0, %s145
      %s148 = sphi 0, %s147
      %s162 = sphi 0, %s148
      %s166 = sphi 0, %s166
      %s168 = sphi 0, %s166
      %s169 = sphi 0, %s168
      %s183 = sphi 0, %s169
      %s189 = sphi 0, %s191
      %s192 = sphi 0, %s189
      %s193 = sphi 0, %s192
      %s209 = sphi 0, %s193
    $region4: #{tpu_custom_call.1} parent=1 // loop_header_branch
      %25 = sbr.rel (%p23) target = $region8
    $region5: #{tpu_custom_call.1} parent=1 // loop_body
      %s27 = ssub.s32 %s22, 1
      %s28 = ssub.s32 %s22, 2
      %s29 = sadd.s32 %s22, 1
      %s30 = ssub.s32 %s22, %s29
      %p31 = scmp.eq.s32.totalorder %s30, 0
      %s33 = sadd.s32 %s32, 1
      %s34 = scalar_select %p31, %s32, %s33
      %p37 = pneg %p31
      %p38 = scmp.eq.s32.totalorder %s22, 1
      %p39 = por %p37, %p38
      %p40 = scmp.ne.s32.totalorder %s32, %s35
      %p41 = scmp.eq.s32.totalorder %s22, 0
      %p42 = por %p40, %p41
      %p43 = scmp.ne.s32.totalorder %s32, %s35
      %p44 = scmp.eq.s32.totalorder %s27, 1
      %p45 = por %p43, %p44
      %p46 = scmp.ne.s32.totalorder %s35, %s36
      %p47 = scmp.eq.s32.totalorder %s27, 0
      %p48 = por %p46, %p47
      %p49 = scmp.ne.s32.totalorder %s35, %s36
      %p50 = scmp.eq.s32.totalorder %s28, 1
      %p51 = por %p49, %p50
      %p53 = scmp.ne.s32.totalorder %s36, %s52
      %p54 = scmp.eq.s32.totalorder %s28, 0
      %p55 = por %p53, %p54
      %s56 = ssub.s32 %s22, %s29
      %p57 = scmp.eq.s32.totalorder %s56, 0
      %s59 = sadd.s32 %s58, 1
      %s60 = scalar_select %p57, %s58, %s59
      %p63 = pneg %p57
      %p64 = scmp.eq.s32.totalorder %s22, 1
      %p65 = por %p63, %p64
      %p66 = scmp.ne.s32.totalorder %s58, %s61
      %p67 = scmp.eq.s32.totalorder %s22, 0
      %p68 = por %p66, %p67
      %p69 = scmp.ne.s32.totalorder %s58, %s61
      %p70 = scmp.eq.s32.totalorder %s27, 1
      %p71 = por %p69, %p70
      %p72 = scmp.ne.s32.totalorder %s61, %s62
      %p73 = scmp.eq.s32.totalorder %s27, 0
      %p74 = por %p72, %p73
      %p75 = scmp.ne.s32.totalorder %s61, %s62
      %p76 = scmp.eq.s32.totalorder %s28, 1
      %p77 = por %p75, %p76
      %p79 = scmp.ne.s32.totalorder %s62, %s78
      %p80 = scmp.eq.s32.totalorder %s28, 0
      %p81 = por %p79, %p80
      %s83 = sadd.s32 %s82, 1
      %p86 = scmp.eq.s32.totalorder %s22, 1
      %p87 = scmp.ne.s32.totalorder %s82, %s84
      %p88 = scmp.eq.s32.totalorder %s22, 0
      %p89 = por %p87, %p88
      %p90 = scmp.ne.s32.totalorder %s82, %s84
      %p91 = scmp.eq.s32.totalorder %s27, 1
      %p92 = por %p90, %p91
      %p93 = scmp.ne.s32.totalorder %s84, %s85
      %p94 = scmp.eq.s32.totalorder %s27, 0
      %p95 = por %p93, %p94
      %p96 = scmp.ne.s32.totalorder %s84, %s85
      %p97 = scmp.eq.s32.totalorder %s28, 1
      %p98 = por %p96, %p97
      %p100 = scmp.ne.s32.totalorder %s85, %s99
      %p101 = scmp.eq.s32.totalorder %s28, 0
      %p102 = por %p100, %p101
      %s104 = sadd.s32 %s103, 1
      %p107 = scmp.eq.s32.totalorder %s22, 1
      %p108 = scmp.ne.s32.totalorder %s103, %s105
      %p109 = scmp.eq.s32.totalorder %s22, 0
      %p110 = por %p108, %p109
      %p111 = scmp.ne.s32.totalorder %s103, %s105
      %p112 = scmp.eq.s32.totalorder %s27, 1
      %p113 = por %p111, %p112
      %p114 = scmp.ne.s32.totalorder %s105, %s106
      %p115 = scmp.eq.s32.totalorder %s27, 0
      %p116 = por %p114, %p115
      %p117 = scmp.ne.s32.totalorder %s105, %s106
      %p118 = scmp.eq.s32.totalorder %s28, 1
      %p119 = por %p117, %p118
      %p121 = scmp.ne.s32.totalorder %s106, %s120
      %p122 = scmp.eq.s32.totalorder %s28, 0
      %p123 = por %p121, %p122
      %s125 = sadd.s32 %s124, 1
      %p128 = scmp.eq.s32.totalorder %s22, 1
      %p129 = scmp.ne.s32.totalorder %s124, %s126
      %p130 = scmp.eq.s32.totalorder %s22, 0
      %p131 = por %p129, %p130
      %p132 = scmp.ne.s32.totalorder %s124, %s126
      %p133 = scmp.eq.s32.totalorder %s27, 1
      %p134 = por %p132, %p133
      %p135 = scmp.ne.s32.totalorder %s126, %s127
      %p136 = scmp.eq.s32.totalorder %s27, 0
      %p137 = por %p135, %p136
      %p138 = scmp.ne.s32.totalorder %s126, %s127
      %p139 = scmp.eq.s32.totalorder %s28, 1
      %p140 = por %p138, %p139
      %p142 = scmp.ne.s32.totalorder %s127, %s141
      %p143 = scmp.eq.s32.totalorder %s28, 0
      %p144 = por %p142, %p143
      %s146 = sadd.s32 %s145, 1
      %p149 = scmp.eq.s32.totalorder %s22, 1
      %p150 = scmp.ne.s32.totalorder %s145, %s147
      %p151 = scmp.eq.s32.totalorder %s22, 0
      %p152 = por %p150, %p151
      %p153 = scmp.ne.s32.totalorder %s145, %s147
      %p154 = scmp.eq.s32.totalorder %s27, 1
      %p155 = por %p153, %p154
      %p156 = scmp.ne.s32.totalorder %s147, %s148
      %p157 = scmp.eq.s32.totalorder %s27, 0
      %p158 = por %p156, %p157
      %p159 = scmp.ne.s32.totalorder %s147, %s148
      %p160 = scmp.eq.s32.totalorder %s28, 1
      %p161 = por %p159, %p160
      %p163 = scmp.ne.s32.totalorder %s148, %s162
      %p164 = scmp.eq.s32.totalorder %s28, 0
      %p165 = por %p163, %p164
      %s167 = sadd.s32 %s166, 1
      %p170 = scmp.eq.s32.totalorder %s22, 1
      %p171 = scmp.ne.s32.totalorder %s166, %s168
      %p172 = scmp.eq.s32.totalorder %s22, 0
      %p173 = por %p171, %p172
      %p174 = scmp.ne.s32.totalorder %s166, %s168
      %p175 = scmp.eq.s32.totalorder %s27, 1
      %p176 = por %p174, %p175
      %p177 = scmp.ne.s32.totalorder %s168, %s169
      %p178 = scmp.eq.s32.totalorder %s27, 0
      %p179 = por %p177, %p178
      %p180 = scmp.ne.s32.totalorder %s168, %s169
      %p181 = scmp.eq.s32.totalorder %s28, 1
      %p182 = por %p180, %p181
      %p184 = scmp.ne.s32.totalorder %s169, %s183
      %p185 = scmp.eq.s32.totalorder %s28, 0
      %p186 = por %p184, %p185
      %s187 = ssub.s32 %s22, %s29
      %p188 = scmp.eq.s32.totalorder %s187, 0
      %s190 = sadd.s32 %s189, 1
      %s191 = scalar_select %p188, %s189, %s190
      %p194 = pneg %p188
      %p195 = scmp.eq.s32.totalorder %s22, 1
      %p196 = por %p194, %p195
      %p197 = scmp.ne.s32.totalorder %s189, %s192
      %p198 = scmp.eq.s32.totalorder %s22, 0
      %p199 = por %p197, %p198
      %p200 = scmp.ne.s32.totalorder %s189, %s192
      %p201 = scmp.eq.s32.totalorder %s27, 1
      %p202 = por %p200, %p201
      %p203 = scmp.ne.s32.totalorder %s192, %s193
      %p204 = scmp.eq.s32.totalorder %s27, 0
      %p205 = por %p203, %p204
      %p206 = scmp.ne.s32.totalorder %s192, %s193
      %p207 = scmp.eq.s32.totalorder %s28, 1
      %p208 = por %p206, %p207
      %p210 = scmp.ne.s32.totalorder %s193, %s209
      %p211 = scmp.eq.s32.totalorder %s28, 0
      %p212 = por %p210, %p211
      %p213 = scmp.le.s32.totalorder 1, %s22
      %p214 = scmp.lt.s32.totalorder %s22, 3
      %p215 = pnand %p213, %p214
      %p216 = pneg %p215
      // Predicated region
      $region9: #{tpu_custom_call.1} parent=5 // pred_check
        _
      $region10: #{tpu_custom_call.1} parent=5 // pred_check_branch
        %218 = sbr.rel (%p215) target = $region12
      $region11: #{tpu_custom_call.1} parent=5 // pred_region
        %s219 = ssub.s32 %s22, 1
        // Predicated region
        $region13: #{tpu_custom_call.1} parent=11 // pred_check
          %p220 = pneg %p95
        $region14: #{tpu_custom_call.1} parent=11 // pred_check_branch
          %222 = sbr.rel (%p220) target = $region16
        $region15: #{tpu_custom_call.1} parent=11 // pred_region
          _
        $region16: #{tpu_custom_call.1} parent=11 // pred_fallthru
          _
        // Predicated region
        $region17: #{tpu_custom_call.1} parent=11 // pred_check
          %p223 = pneg %p116
        $region18: #{tpu_custom_call.1} parent=11 // pred_check_branch
          %225 = sbr.rel (%p223) target = $region20
        $region19: #{tpu_custom_call.1} parent=11 // pred_region
          _
        $region20: #{tpu_custom_call.1} parent=11 // pred_fallthru
          _
        // Predicated region
        $region21: #{tpu_custom_call.1} parent=11 // pred_check
          %p226 = pneg %p137
        $region22: #{tpu_custom_call.1} parent=11 // pred_check_branch
          %228 = sbr.rel (%p226) target = $region24
        $region23: #{tpu_custom_call.1} parent=11 // pred_region
          _
        $region24: #{tpu_custom_call.1} parent=11 // pred_fallthru
          _
        // Predicated region
        $region25: #{tpu_custom_call.1} parent=11 // pred_check
          %p229 = pneg %p158
        $region26: #{tpu_custom_call.1} parent=11 // pred_check_branch
          %231 = sbr.rel (%p229) target = $region28
        $region27: #{tpu_custom_call.1} parent=11 // pred_region
          _
        $region28: #{tpu_custom_call.1} parent=11 // pred_fallthru
          _
        // Predicated region
        $region29: #{tpu_custom_call.1} parent=11 // pred_check
          %p232 = pneg %p179
        $region30: #{tpu_custom_call.1} parent=11 // pred_check_branch
          %234 = sbr.rel (%p232) target = $region32
        $region31: #{tpu_custom_call.1} parent=11 // pred_region
          _
        $region32: #{tpu_custom_call.1} parent=11 // pred_fallthru
          _
      $region12: #{tpu_custom_call.1} parent=5 // pred_fallthru
        _
      %p235 = scmp.lt.s32.totalorder %s22, 2
      // Predicated region
      $region33: #{tpu_custom_call.1} parent=5 // pred_check
        %p236 = pneg %p235
      $region34: #{tpu_custom_call.1} parent=5 // pred_check_branch
        %238 = sbr.rel (%p236) target = $region36
      $region35: #{tpu_custom_call.1} parent=5 // pred_region
        // Predicated region
        $region37: #{tpu_custom_call.1} parent=35 // pred_check
          %p239 = pneg %p42
        $region38: #{tpu_custom_call.1} parent=35 // pred_check_branch
          %241 = sbr.rel (%p239) target = $region40
        $region39: #{tpu_custom_call.1} parent=35 // pred_region
          %s242 = sand.u32 %s32, 1
          %s243 = scalar_lea.sflag [#allocation3], %s242
          %s244 = sand.u32 %s32, 1
          %s245 = smul.addr %s244, 8
          %s246 = scalar_lea.vmem [#allocation2], %s245
          %s248 = ssub.s32 128, 128
          %249 = vsyncadd %s243, %s248
          %s250 = smul.addr %s22, 2
          %s251 = smul.addr %s250, 64
          %s252 = scalar_lea.hbm %s0, %s251
          %s254 = sshll.u32 %s246, 4
          %s255 = int_to_ptr.vmem [resolvable:$true] %s254
          %257 = dma.hbm_to_vmem [thread:$0]  %s252, 128, %s255, %s243
        $region40: #{tpu_custom_call.1} parent=35 // pred_fallthru
          _
        // Predicated region
        $region41: #{tpu_custom_call.1} parent=35 // pred_check
          %p258 = pneg %p68
        $region42: #{tpu_custom_call.1} parent=35 // pred_check_branch
          %260 = sbr.rel (%p258) target = $region44
        $region43: #{tpu_custom_call.1} parent=35 // pred_region
          %s261 = sand.u32 %s58, 1
          %s262 = scalar_lea.sflag [#allocation6], %s261
          %s263 = sand.u32 %s58, 1
          %s264 = smul.addr %s263, 8
          %s265 = scalar_lea.vmem [#allocation5], %s264
          %s267 = ssub.s32 128, 128
          %268 = vsyncadd %s262, %s267
          %s269 = smul.addr %s22, 2
          %s270 = smul.addr %s269, 64
          %s271 = scalar_lea.hbm %s1, %s270
          %s273 = sshll.u32 %s265, 4
          %s274 = int_to_ptr.vmem [resolvable:$true] %s273
          %276 = dma.hbm_to_vmem [thread:$0]  %s271, 128, %s274, %s262
        $region44: #{tpu_custom_call.1} parent=35 // pred_fallthru
          _
      $region36: #{tpu_custom_call.1} parent=5 // pred_fallthru
        _
      %p277 = scmp.le.s32.totalorder 1, %s22
      %p278 = scmp.lt.s32.totalorder %s22, 3
      %p279 = pnand %p277, %p278
      %p280 = pneg %p279
      // Predicated region
      $region45: #{tpu_custom_call.1} parent=5 // pred_check
        _
      $region46: #{tpu_custom_call.1} parent=5 // pred_check_branch
        %282 = sbr.rel (%p279) target = $region48
      $region47: #{tpu_custom_call.1} parent=5 // pred_region
        %s283 = ssub.s32 %s22, 1
        %s284 = sand.u32 %s35, 1
        %s285 = scalar_lea.sflag [#allocation3], %s284
        %s286 = sand.u32 %s35, 1
        %s287 = smul.addr %s286, 8
        %s288 = scalar_lea.vmem [#allocation2], %s287
        // Predicated region
        $region49: #{tpu_custom_call.1} parent=47 // pred_check
          %p289 = pneg %p48
        $region50: #{tpu_custom_call.1} parent=47 // pred_check_branch
          %291 = sbr.rel (%p289) target = $region52
        $region51: #{tpu_custom_call.1} parent=47 // pred_region
          %292 = dma.done %s285, 128
        $region52: #{tpu_custom_call.1} parent=47 // pred_fallthru
          _
        %s293 = sand.u32 %s61, 1
        %s294 = scalar_lea.sflag [#allocation6], %s293
        %s295 = sand.u32 %s61, 1
        %s296 = smul.addr %s295, 8
        %s297 = scalar_lea.vmem [#allocation5], %s296
        // Predicated region
        $region53: #{tpu_custom_call.1} parent=47 // pred_check
          %p298 = pneg %p74
        $region54: #{tpu_custom_call.1} parent=47 // pred_check_branch
          %300 = sbr.rel (%p298) target = $region56
        $region55: #{tpu_custom_call.1} parent=47 // pred_region
          %301 = dma.done %s294, 128
        $region56: #{tpu_custom_call.1} parent=47 // pred_fallthru
          _
        %s302 = sand.u32 %s35, 1
        %s303 = scalar_lea.sflag [#allocation3], %s302
        %s304 = sand.u32 %s35, 1
        %s305 = smul.addr %s304, 8
        %s306 = scalar_lea.vmem [#allocation2], %s305
        %p307 = pneg %p48
        %p308 = pneg %p45
        %s309 = sand.u32 %s61, 1
        %s310 = scalar_lea.sflag [#allocation6], %s309
        %s311 = sand.u32 %s61, 1
        %s312 = smul.addr %s311, 8
        %s313 = scalar_lea.vmem [#allocation5], %s312
        %p314 = pneg %p74
        %p315 = pneg %p71
        %p316 = pneg %p95
        %p317 = pneg %p92
        %p318 = pneg %p116
        %p319 = pneg %p113
        %p320 = pneg %p137
        %p321 = pneg %p134
        %p322 = pneg %p158
        %p323 = pneg %p155
        %p324 = pneg %p179
        %p325 = pneg %p176
        %p326 = pneg %p205
        %p327 = pneg %p202
        %s328 = sand.u32 %s192, 1
        %s329 = scalar_lea.sflag [#allocation4], %s328
        %s330 = sand.u32 %s192, 1
        %s331 = smul.addr %s330, 8
        %s332 = scalar_lea.vmem [#allocation7], %s331
        %v333 = vld [vmem:[%s288] sm:$0xff]
        %v334 = vld [vmem:[%s297] sm:$0xff]
        %v336 = vcombine.high %v333, %v333
        %vm338 = vcmask 1043456
        %v339 = vsel %vm338, %v333, 0.0
        %v340 = vsel %vm338, %v336, 0.0
        %v341 = vadd.f32 %v339, %v340
        %342 = vadd.xlane.f32.xlu0 %v341
        %v343 = vpop.xlane.xlu0 %342
        %v344 = vmul.f32 %v343, 0.00390625
        %v346 = vcombine.high %v334, %v334
        %v348 = vsel %vm338, %v334, 0.0
        %v349 = vsel %vm338, %v346, 0.0
        %v350 = vadd.f32 %v348, %v349
        %351 = vadd.xlane.f32.xlu0 %v350
        %v352 = vpop.xlane.xlu0 %351
        %v353 = vmul.f32 %v352, 0.00390625
        %v354 = vld [vmem:[%s2] sm:$0xf]
        %v355 = vld [vmem:[%s3] sm:$0xf]
        %v356 = vld [vmem:[%s4] sm:$0xf]
        %v357 = vld [vmem:[%s5] sm:$0x1]
        %v358 = vld [vmem:[%s6] sm:$0x1]
        %v359 = vmul.f32 %v344, %v354
        %vm360 = vcmask 27648
        %v361 = vsel %vm360, %v359, 0.0
        %v362 = vrot.slane %v361, 4
        %v363 = vadd.f32 %v361, %v362
        %v364 = vrot.slane %v363, 2
        %v365 = vadd.f32 %v363, %v364
        %v366 = vrot.slane %v365, 1
        %v367 = vadd.f32 %v365, %v366
        %v368 = vmul.f32 %v353, %v355
        %v369 = vsel %vm360, %v368, 0.0
        %v370 = vrot.slane %v369, 4
        %v371 = vadd.f32 %v369, %v370
        %v372 = vrot.slane %v371, 2
        %v373 = vadd.f32 %v371, %v372
        %v374 = vrot.slane %v373, 1
        %v375 = vadd.f32 %v373, %v374
        %v376 = vadd.f32 %v367, %v375
        %v377 = vadd.f32 %v376, %v357
        %v378 = vmax.f32 %v377, 0.0
        %v379 = vlaneseq
        %v380 = vshrl.u32 %v379, 7
        %v381 = vsub.s32 0, %v380
        %v382 = vrot.slane %v378, %v381
        %384 = vbcast.lane.b32.xlu0 %v382, 256
        %v385 = vpop.permute.xlu0 %384
        %v386 = vmul.f32 %v385, %v356
        %v387 = vsel %vm360, %v386, 0.0
        %v388 = vrot.slane %v387, 4
        %v389 = vadd.f32 %v387, %v388
        %v390 = vrot.slane %v389, 2
        %v391 = vadd.f32 %v389, %v390
        %v392 = vrot.slane %v391, 1
        %v393 = vadd.f32 %v391, %v392
        %v394 = vadd.f32 %v393, %v358
        %v395 = vsub.f32 0.0, %v394
        %v396 = vmul.f32 %v395, 1.442695
        %v397 = vpow.pop %v396
        %v398 = vadd.f32 %v397, 1.0
        %v399 = vrcp.pop %v398
        %v400 = vmul.f32 1.0, %v399
        %v401 = vlaneseq
        %v402 = vshrl.u32 %v401, 7
        %v403 = vsub.s32 0, %v402
        %v404 = vrot.slane %v400, %v403
        %406 = vbcast.lane.b32.xlu0 %v404, 256
        %v407 = vpop.permute.xlu0 %406
        %v408 = vmul.f32 %v407, %v334
        %v409 = vmul.f32 %v407, %v346
        %v410 = vadd.f32 %v408, %v333
        %v411 = vadd.f32 %v409, %v336
        %v414 = vcombine.low %v410, %v411
        %416 = vst [vmem:[%s332] sm:$0xff] %v414
        %s417 = sand.u32 %s192, 1
        %s418 = scalar_lea.sflag [#allocation4], %s417
        %s419 = sand.u32 %s192, 1
        %s420 = smul.addr %s419, 8
        %s421 = scalar_lea.vmem [#allocation7], %s420
        // Predicated region
        $region57: #{tpu_custom_call.1} parent=47 // pred_check
          %p422 = pneg %p202
        $region58: #{tpu_custom_call.1} parent=47 // pred_check_branch
          %424 = sbr.rel (%p422) target = $region60
        $region59: #{tpu_custom_call.1} parent=47 // pred_region
          %s426 = ssub.s32 128, 128
          %427 = vsyncadd %s418, %s426
          %s428 = smul.addr %s27, 2
          %s429 = smul.addr %s428, 64
          %s430 = scalar_lea.hbm %s7, %s429
          %s432 = sshll.u32 %s421, 4
          %s433 = int_to_ptr.vmem [resolvable:$true] %s432
          %435 = dma.vmem_to_hbm [thread:$0]  %s433, 128, %s430, %s418
        $region60: #{tpu_custom_call.1} parent=47 // pred_fallthru
          _
      $region48: #{tpu_custom_call.1} parent=5 // pred_fallthru
        _
      %p436 = scmp.le.s32.totalorder 2, %s22
      // Predicated region
      $region61: #{tpu_custom_call.1} parent=5 // pred_check
        %p437 = pneg %p436
      $region62: #{tpu_custom_call.1} parent=5 // pred_check_branch
        %439 = sbr.rel (%p437) target = $region64
      $region63: #{tpu_custom_call.1} parent=5 // pred_region
        %s440 = ssub.s32 %s22, 2
        // Predicated region
        $region65: #{tpu_custom_call.1} parent=63 // pred_check
          %p441 = pneg %p208
        $region66: #{tpu_custom_call.1} parent=63 // pred_check_branch
          %443 = sbr.rel (%p441) target = $region68
        $region67: #{tpu_custom_call.1} parent=63 // pred_region
          %s444 = sand.u32 %s193, 1
          %s445 = scalar_lea.sflag [#allocation4], %s444
          %s446 = sand.u32 %s193, 1
          %s447 = smul.addr %s446, 8
          %s448 = scalar_lea.vmem [#allocation7], %s447
          %449 = dma.done %s445, 128
        $region68: #{tpu_custom_call.1} parent=63 // pred_fallthru
          _
      $region64: #{tpu_custom_call.1} parent=5 // pred_fallthru
        _
    $region6: #{tpu_custom_call.1} parent=1 // loop_footer
      %s26 = sadd.s32 1, %s22
    $region7: #{tpu_custom_call.1} parent=1 // loop_footer_branch
      %21 = sbr.rel target = $region3
    $region8: #{tpu_custom_call.1} parent=1 // loop_exit
      _
    %450 = vsyncpa [#allocation3], 1
    %s451 = scalar_lea.sflag [#allocation3], 1
    %452 = vsyncpa %s451, 1
    %453 = vsyncpa [#allocation6], 1
    %s454 = scalar_lea.sflag [#allocation6], 1
    %455 = vsyncpa %s454, 1
    %456 = vsyncpa [#allocation4], 1
    %s457 = scalar_lea.sflag [#allocation4], 1
    %458 = vsyncpa %s457, 1

</llo_original>
